<compile_context>
chip_gen: v7x
topology: tpu7x:2x2x1
jax: 0.10.0
libtpu: 0.0.40
codegen_flags: <defaults>
</compile_context>

<pallas_src>
import jax
import jax.numpy as jnp
from jax.experimental import pallas as pl
from jax.experimental.pallas import tpu as pltpu


def _spatial_split_2d_kernel(x_ref, p_ref, z_ref):
    # x_ref: (tb, tc, hh, 2W)   row-pair packed input tile (lane-dense: 2W lanes)
    # p_ref: (2W, 2W)           0/1 column permutation, columns = [z1 | z2 | z3 | z4]
    # z_ref: (tb, 4, tc, hh, wh)
    tb, tc, hh, w2 = x_ref.shape
    wh = w2 // 4

    # One large 2-D matmul per grid step: fold batch, channels and rows into M.
    x2 = x_ref[...].astype(jnp.float32).reshape(tb * tc * hh, w2)
    y = jax.lax.dot(
        x2,
        p_ref[...].astype(jnp.float32),
        precision=jax.lax.Precision.HIGHEST,   # exact for a 0/1 permutation matrix
        preferred_element_type=jnp.float32,
    )
    y = y.reshape(tb, tc, hh, w2).astype(z_ref.dtype)

    # Columns of y are already grouped per quadrant; write each channel group with one
    # contiguous (tb, tc, hh, wh) block store (torch.cat order: ee, eo, oe, oo).
    z_ref[:, 0] = y[..., 0 * wh:1 * wh]
    z_ref[:, 1] = y[..., 1 * wh:2 * wh]
    z_ref[:, 2] = y[..., 2 * wh:3 * wh]
    z_ref[:, 3] = y[..., 3 * wh:4 * wh]


def _pick_tiles(b, c, h, w, itemsize, x_tile_bytes=1 << 20):
    """Fold batch/channels into each grid step: aim for ~1 MiB of x per step while
    keeping the double-buffered working set well inside the scoped-VMEM budget."""
    per_image = h * w * itemsize
    max_images = max(1, x_tile_bytes // per_image)

    if c <= max_images:
        tc = c
    else:
        # The output block needs tc == C or tc % 8 == 0 (sublane rule on the tiled
        # channel dim); pick the largest multiple-of-8 divisor of C that fits, else
        # fall back to the full channel dim.
        tc = c
        for d in range(8, max_images + 1, 8):
            if c % d == 0:
                tc = d

    tb = 1
    max_tb = max(1, max_images // tc)
    for d in range(1, min(b, max_tb) + 1):
        if b % d == 0:
            tb = d
    return tb, tc


def spatial_split_forward(x):
    """SpatialSplit.forward for the 2D case (h > 1 and w > 1). Returns (z, ladj)."""
    b, c, h, w = x.shape
    # TODO(synk): the 1DH (h==1) / 1DW (w==1) stride-4 branches are not implemented;
    # the example input exercises the 2D branch only.
    assert h > 1 and w > 1 and h % 2 == 0 and w % 2 == 0
    hh, wh = h // 2, w // 2
    two_w = 2 * w

    # Free, contiguous reshape: row i of length 2W is [x[.., 2i, :] | x[.., 2i+1, :]].
    x_pairs = x.reshape(b, c, hh, two_w)

    # Exact 0/1 column permutation: output column q*wh + j picks input column
    # (q//2)*W + 2*j + (q%2)   with quadrant q = 2*row_parity + col_parity.
    dst = jnp.arange(two_w)
    quad = dst // wh
    col = dst % wh
    src = (quad // 2) * w + 2 * col + (quad % 2)
    perm = (jnp.arange(two_w)[:, None] == src[None, :]).astype(jnp.float32)

    tb, tc = _pick_tiles(b, c, h, w, jnp.dtype(x.dtype).itemsize)

    z5 = pl.pallas_call(
        _spatial_split_2d_kernel,
        out_shape=jax.ShapeDtypeStruct((b, 4, c, hh, wh), x.dtype),
        grid_spec=pltpu.PrefetchScalarGridSpec(
            num_scalar_prefetch=0,
            grid=(b // tb, c // tc),
            in_specs=[
                pl.BlockSpec((tb, tc, hh, two_w), lambda i, j: (i, j, 0, 0)),
                pl.BlockSpec((two_w, two_w), lambda i, j: (0, 0)),
            ],
            out_specs=pl.BlockSpec((tb, 4, tc, hh, wh), lambda i, j: (i, 0, j, 0, 0)),
        ),
        compiler_params=pltpu.CompilerParams(
            dimension_semantics=("parallel", "parallel"),
            vmem_limit_bytes=32 * 1024 * 1024,
        ),
    )(x_pairs, perm)

    # Free reshape back to the PyTorch channel layout: (B, 4, C, hh, wh) -> (B, 4C, hh, wh).
    z = z5.reshape(b, 4 * c, hh, wh)
    ladj = jnp.zeros((b,), dtype=x.dtype)   # x.new_zeros(b): trivial glue in plain JAX
    return z, ladj


def _reference_forward(x):
    b, c, h, w = x.shape
    o_shape = (b, c, h // 2, w // 2)
    z1 = x[..., ::2, ::2].reshape(o_shape)
    z2 = x[..., ::2, 1::2].reshape(o_shape)
    z3 = x[..., 1::2, ::2].reshape(o_shape)
    z4 = x[..., 1::2, 1::2].reshape(o_shape)
    z = jnp.concatenate((z1, z2, z3, z4), axis=1)
    return z, jnp.zeros((b,), x.dtype)


if __name__ == "__main__":
    key = jax.random.PRNGKey(0)
    x = jax.random.normal(key, (2, 4, 16, 16), dtype=jnp.float32)

    z, ladj = spatial_split_forward(x)
    z = jax.block_until_ready(z)
    ladj = jax.block_until_ready(ladj)

    z_ref, ladj_ref = _reference_forward(x)
    assert z.shape == (2, 16, 8, 8) and z.dtype == x.dtype
    assert ladj.shape == (2,)
    assert jnp.array_equal(z, z_ref)
    assert jnp.array_equal(ladj, ladj_ref)
    print("KERNEL_OK")
</pallas_src>

<mosaic_0001>
module attributes {stable_mosaic.version = 11 : i64} {
  func.func @_spatial_split_2d_kernel(%arg0: i32, %arg1: i32, %arg2: memref<2x4x8x32xf32, #tpu.memory_space<vmem>>, %arg3: memref<32x32xf32, #tpu.memory_space<vmem>>, %arg4: memref<2x4x4x8x8xf32, #tpu.memory_space<vmem>>) attributes {dimension_semantics = [#tpu.dimension_semantics<parallel>, #tpu.dimension_semantics<parallel>], iteration_bounds = array<i64: 1, 1>, scalar_prefetch = 0 : i64, scratch_operands = 0 : i64, tpu.core_type = #tpu.core_type<tc>, window_params = [{transform_indices = @transform_0, window_bounds = array<i64: 2, 4, 8, 32>}, {pipeline_mode = #tpu.pipeline_mode<synchronous>, transform_indices = @transform_1, window_bounds = array<i64: 32, 32>}, {transform_indices = @transform_2, window_bounds = array<i64: 2, 4, 4, 8, 8>}]} {
    %c0 = arith.constant 0 : index
    %c0_0 = arith.constant 0 : index
    %c0_1 = arith.constant 0 : index
    %c0_2 = arith.constant 0 : index
    %0 = vector.load %arg2[%c0, %c0_0, %c0_1, %c0_2] : memref<2x4x8x32xf32, #tpu.memory_space<vmem>>, vector<2x4x8x32xf32>
    %1 = vector.shape_cast %0 : vector<2x4x8x32xf32> to vector<64x32xf32>
    %c0_3 = arith.constant 0 : index
    %c0_4 = arith.constant 0 : index
    %2 = vector.load %arg3[%c0_3, %c0_4] : memref<32x32xf32, #tpu.memory_space<vmem>>, vector<32x32xf32>
    %cst = arith.constant dense<0.000000e+00> : vector<64x32xf32>
    %3 = tpu.matmul %1, %2, %cst {dimension_numbers = #tpu.dot_dimension_numbers<[1], [0], [0], [1], [0, 0, 1, 1], [], []>, precision = #tpu.contract_precision<fp32>} : vector<64x32xf32>, vector<32x32xf32>, vector<64x32xf32> -> vector<64x32xf32>
    %4 = vector.shape_cast %3 : vector<64x32xf32> to vector<2x4x8x32xf32>
    %5 = vector.extract_strided_slice %4 {offsets = [0, 0, 0, 0], sizes = [2, 4, 8, 8], strides = [1, 1, 1, 1]} : vector<2x4x8x32xf32> to vector<2x4x8x8xf32>
    %c0_5 = arith.constant 0 : index
    %c0_6 = arith.constant 0 : index
    %c0_7 = arith.constant 0 : index
    %c0_8 = arith.constant 0 : index
    %c0_9 = arith.constant 0 : index
    %6 = vector.load %arg4[%c0_5, %c0_6, %c0_7, %c0_8, %c0_9] : memref<2x4x4x8x8xf32, #tpu.memory_space<vmem>>, vector<2x1x4x8x8xf32>
    %7 = vector.shape_cast %6 : vector<2x1x4x8x8xf32> to vector<2x4x8x8xf32>
    %8 = vector.shape_cast %5 : vector<2x4x8x8xf32> to vector<2x1x4x8x8xf32>
    tpu.vector_store %arg4[%c0_5, %c0_6, %c0_7, %c0_8, %c0_9], %8 {strides = array<i32>} : memref<2x4x4x8x8xf32, #tpu.memory_space<vmem>>, vector<2x1x4x8x8xf32>,
    %9 = vector.extract_strided_slice %4 {offsets = [0, 0, 0, 8], sizes = [2, 4, 8, 8], strides = [1, 1, 1, 1]} : vector<2x4x8x32xf32> to vector<2x4x8x8xf32>
    %c0_10 = arith.constant 0 : index
    %c1 = arith.constant 1 : index
    %c0_11 = arith.constant 0 : index
    %c0_12 = arith.constant 0 : index
    %c0_13 = arith.constant 0 : index
    %10 = vector.load %arg4[%c0_10, %c1, %c0_11, %c0_12, %c0_13] : memref<2x4x4x8x8xf32, #tpu.memory_space<vmem>>, vector<2x1x4x8x8xf32>
    %11 = vector.shape_cast %10 : vector<2x1x4x8x8xf32> to vector<2x4x8x8xf32>
    %12 = vector.shape_cast %9 : vector<2x4x8x8xf32> to vector<2x1x4x8x8xf32>
    tpu.vector_store %arg4[%c0_10, %c1, %c0_11, %c0_12, %c0_13], %12 {strides = array<i32>} : memref<2x4x4x8x8xf32, #tpu.memory_space<vmem>>, vector<2x1x4x8x8xf32>,
    %13 = vector.extract_strided_slice %4 {offsets = [0, 0, 0, 16], sizes = [2, 4, 8, 8], strides = [1, 1, 1, 1]} : vector<2x4x8x32xf32> to vector<2x4x8x8xf32>
    %c0_14 = arith.constant 0 : index
    %c2 = arith.constant 2 : index
    %c0_15 = arith.constant 0 : index
    %c0_16 = arith.constant 0 : index
    %c0_17 = arith.constant 0 : index
    %14 = vector.load %arg4[%c0_14, %c2, %c0_15, %c0_16, %c0_17] : memref<2x4x4x8x8xf32, #tpu.memory_space<vmem>>, vector<2x1x4x8x8xf32>
    %15 = vector.shape_cast %14 : vector<2x1x4x8x8xf32> to vector<2x4x8x8xf32>
    %16 = vector.shape_cast %13 : vector<2x4x8x8xf32> to vector<2x1x4x8x8xf32>
    tpu.vector_store %arg4[%c0_14, %c2, %c0_15, %c0_16, %c0_17], %16 {strides = array<i32>} : memref<2x4x4x8x8xf32, #tpu.memory_space<vmem>>, vector<2x1x4x8x8xf32>,
    %17 = vector.extract_strided_slice %4 {offsets = [0, 0, 0, 24], sizes = [2, 4, 8, 8], strides = [1, 1, 1, 1]} : vector<2x4x8x32xf32> to vector<2x4x8x8xf32>
    %c0_18 = arith.constant 0 : index
    %c3 = arith.constant 3 : index
    %c0_19 = arith.constant 0 : index
    %c0_20 = arith.constant 0 : index
    %c0_21 = arith.constant 0 : index
    %18 = vector.load %arg4[%c0_18, %c3, %c0_19, %c0_20, %c0_21] : memref<2x4x4x8x8xf32, #tpu.memory_space<vmem>>, vector<2x1x4x8x8xf32>
    %19 = vector.shape_cast %18 : vector<2x1x4x8x8xf32> to vector<2x4x8x8xf32>
    %20 = vector.shape_cast %17 : vector<2x4x8x8xf32> to vector<2x1x4x8x8xf32>
    tpu.vector_store %arg4[%c0_18, %c3, %c0_19, %c0_20, %c0_21], %20 {strides = array<i32>} : memref<2x4x4x8x8xf32, #tpu.memory_space<vmem>>, vector<2x1x4x8x8xf32>,
    return
  }
  func.func @transform_0(%arg0: i32, %arg1: i32) -> (i32, i32, i32, i32) {
    %c0_i32 = arith.constant 0 : i32
    %c0_i32_0 = arith.constant 0 : i32
    %c0_i32_1 = arith.constant 0 : i32
    return %arg0, %arg1, %c0_i32, %c0_i32_0 : i32, i32, i32, i32
  }
  func.func @transform_1(%arg0: i32, %arg1: i32) -> (i32, i32) {
    %c0_i32 = arith.constant 0 : i32
    %c0_i32_0 = arith.constant 0 : i32
    %c0_i32_1 = arith.constant 0 : i32
    return %c0_i32, %c0_i32_0 : i32, i32
  }
  func.func @transform_2(%arg0: i32, %arg1: i32) -> (i32, i32, i32, i32, i32) {
    %c0_i32 = arith.constant 0 : i32
    %c0_i32_0 = arith.constant 0 : i32
    %c0_i32_1 = arith.constant 0 : i32
    %c0_i32_2 = arith.constant 0 : i32
    return %arg0, %c0_i32, %arg1, %c0_i32_0, %c0_i32_1 : i32, i32, i32, i32, i32
  }
}

</mosaic_0001>

<llo_original>
// kernel: tpu_custom_call.1
$region0: #{tpu_custom_call.1}
  #allocation0 [shape = 'u32[]', space=smem, size = 0x4, offset = 0x4, fixed_abs, tag = 'smem constant byte address 0x4 - core index']
  #allocation1 [shape = 'u32[144,128]{1,0:T(1,128)}', space=vmem, size = 0x12000, scoped, tag = 'internal scratch']
  %s0 = inlined_call_operand.hbm [shape: f32[2,4,8,32], index: 0, kind: input, shape index: {}]
  %s1 = inlined_call_operand.hbm [shape: f32[32,32], index: 1, kind: input, shape index: {}]
  %s2 = inlined_call_operand.hbm [shape: f32[2,4,4,8,8], index: 2, kind: output, shape index: {}]
  %s3 = sld [smem:[#allocation0]]
  $region26: #{tpu_custom_call.1} parent=0
    _
  %s5 = ssub.s32 1, %s3
  %s6 = scalar_select 0, %s5, %s3
  $region1: #{tpu_custom_call.1} parent=0
    #allocation2 [shape = 'u8[32768]{0}', space=vmem, size = 0x8000, scoped, tag = 'input window, operand 0, single buffered']
    #allocation3 [shape = 's32[1]{0}', space=sflag, size = 0x4, scoped, tag = 'scoped memory for tpu_custom_call.1']
    #allocation4 [shape = 's32[1]{0}', space=sflag, size = 0x4, scoped, tag = 'scoped memory for tpu_custom_call.1']
    #allocation5 [shape = 'u8[16384]{0}', space=vmem, size = 0x4000, scoped, tag = 'input window, operand 1, single buffered']
    #allocation6 [shape = 's32[1]{0}', space=sflag, size = 0x4, scoped, tag = 'scoped memory for tpu_custom_call.1']
    #allocation7 [shape = 'u8[131072]{0}', space=vmem, size = 0x20000, scoped, tag = 'output window, operand 0, single buffered']
    %7 = vsyncpa [#allocation3], 0
    %8 = vsyncpa [#allocation6], 0
    %9 = vsyncpa [#allocation4], 0
    // Predicated region
    $region2: #{tpu_custom_call.1} parent=1 // pred_check
      _
    $region3: #{tpu_custom_call.1} parent=1 // pred_check_branch
      %11 = sbr.rel (0) target = $region5
    $region4: #{tpu_custom_call.1} parent=1 // pred_region
      %s13 = ssub.s32 1024, 1024
      %14 = vsyncadd [#allocation3], %s13
      %s15 = sshll.u32 [#allocation2], 4
      %s16 = int_to_ptr.vmem [resolvable:$true] %s15
      %21 = dma.hbm_to_vmem [thread:$0]  %s0, 1024, %s16, [#allocation3], 128, 128, 8
    $region5: #{tpu_custom_call.1} parent=1 // pred_fallthru
      _
    // Predicated region
    $region6: #{tpu_custom_call.1} parent=1 // pred_check
      _
    $region7: #{tpu_custom_call.1} parent=1 // pred_check_branch
      %23 = sbr.rel (0) target = $region9
    $region8: #{tpu_custom_call.1} parent=1 // pred_region
      %s25 = ssub.s32 512, 512
      %26 = vsyncadd [#allocation6], %s25
      %s27 = sshll.u32 [#allocation5], 4
      %s28 = int_to_ptr.vmem [resolvable:$true] %s27
      %33 = dma.hbm_to_vmem [thread:$0]  %s1, 512, %s28, [#allocation6], 128, 128, 8
    $region9: #{tpu_custom_call.1} parent=1 // pred_fallthru
      _
    // Predicated region
    $region10: #{tpu_custom_call.1} parent=1 // pred_check
      _
    $region11: #{tpu_custom_call.1} parent=1 // pred_check_branch
      %35 = sbr.rel (0) target = $region13
    $region12: #{tpu_custom_call.1} parent=1 // pred_region
      %36 = dma.done [#allocation3], 1024
    $region13: #{tpu_custom_call.1} parent=1 // pred_fallthru
      _
    // Predicated region
    $region14: #{tpu_custom_call.1} parent=1 // pred_check
      _
    $region15: #{tpu_custom_call.1} parent=1 // pred_check_branch
      %38 = sbr.rel (0) target = $region17
    $region16: #{tpu_custom_call.1} parent=1 // pred_region
      %39 = dma.done [#allocation6], 512
    $region17: #{tpu_custom_call.1} parent=1 // pred_fallthru
      _
    %v40 = vld [vmem:[#allocation2] sm:$0xff]
    %v41 = vld [vmem:[#allocation2 + $0x8] sm:$0xff]
    %v42 = vld [vmem:[#allocation2 + $0x10] sm:$0xff]
    %v43 = vld [vmem:[#allocation2 + $0x18] sm:$0xff]
    %v44 = vld [vmem:[#allocation2 + $0x20] sm:$0xff]
    %v45 = vld [vmem:[#allocation2 + $0x28] sm:$0xff]
    %v46 = vld [vmem:[#allocation2 + $0x30] sm:$0xff]
    %v47 = vld [vmem:[#allocation2 + $0x38] sm:$0xff]
    %v48 = vld [vmem:[#allocation5] sm:$0xff]
    %v49 = vld [vmem:[#allocation5 + $0x8] sm:$0xff]
    %v50 = vld [vmem:[#allocation5 + $0x10] sm:$0xff]
    %v51 = vld [vmem:[#allocation5 + $0x18] sm:$0xff]
    %vm52 = vcmask 261120
    %v54 = vsel %vm52, %v40, 0
    %v57 = vsel %vm52, %v41, 0
    %v60 = vsel %vm52, %v42, 0
    %v63 = vsel %vm52, %v43, 0
    %v66 = vsel %vm52, %v44, 0
    %v69 = vsel %vm52, %v45, 0
    %v72 = vsel %vm52, %v46, 0
    %v75 = vsel %vm52, %v47, 0
    %77 = vmatprep.subr.mxu0 0.0
    %v78 = vand.u32 %v48, 4294901760
    %79 = vmatpush1.msra.mxu0 %v78
    %80 = vmatprep.subr.mxu0 0.0
    %v81 = vand.u32 %v49, 4294901760
    %82 = vmatpush1.msra.mxu0 %v81
    %83 = vmatprep.subr.mxu0 0.0
    %v84 = vand.u32 %v50, 4294901760
    %85 = vmatpush1.msra.mxu0 %v84
    %86 = vmatprep.subr.mxu0 0.0
    %v87 = vand.u32 %v51, 4294901760
    %88 = vmatpush1.msra.mxu0 %v87
    %89 = vmatprep.subr.mxu0 0.0
    %90 = vmatpush1.msra.mxu0 0.0
    %91 = vmatprep.subr.mxu0 0.0
    %92 = vmatpush1.msra.mxu0 0.0
    %93 = vmatprep.subr.mxu0 0.0
    %94 = vmatpush1.msra.mxu0 0.0
    %95 = vmatprep.subr.mxu0 0.0
    %96 = vmatpush1.msra.mxu0 0.0
    %97 = vmatprep.subr.mxu0 0.0
    %98 = vmatpush1.msra.mxu0 0.0
    %99 = vmatprep.subr.mxu0 0.0
    %100 = vmatpush1.msra.mxu0 0.0
    %101 = vmatprep.subr.mxu0 0.0
    %102 = vmatpush1.msra.mxu0 0.0
    %103 = vmatprep.subr.mxu0 0.0
    %104 = vmatpush1.msra.mxu0 0.0
    %105 = vmatprep.subr.mxu0 0.0
    %106 = vmatpush1.msra.mxu0 0.0
    %107 = vmatprep.subr.mxu0 0.0
    %108 = vmatpush1.msra.mxu0 0.0
    %109 = vmatprep.subr.mxu0 0.0
    %110 = vmatpush1.msra.mxu0 0.0
    %111 = vmatprep.subr.mxu0 0.0
    %112 = vmatpush1.msra.mxu0 0.0
    %113 = vmatprep.subr.mxu0 0.0
    %114 = vmatpush1.msra.mxu0 0.0
    %115 = vmatprep.subr.mxu0 0.0
    %116 = vmatpush1.msra.mxu0 0.0
    %117 = vmatprep.subr.mxu0 0.0
    %118 = vmatpush1.msra.mxu0 0.0
    %119 = vmatprep.subr.mxu0 0.0
    %120 = vmatpush1.msra.mxu0 0.0
    %121 = vmatprep.subr.mxu0 0.0
    %122 = vmatpush1.msra.mxu0 0.0
    %123 = vmatprep.subr.mxu0 0.0
    %124 = vmatpush1.msra.mxu0 0.0
    %125 = vmatprep.subr.mxu0 0.0
    %126 = vmatpush1.msra.mxu0 0.0
    %127 = vmatprep.subr.mxu0 0.0
    %128 = vmatpush1.msra.mxu0 0.0
    %129 = vmatprep.subr.mxu0 0.0
    %130 = vmatpush1.msra.mxu0 0.0
    %131 = vmatprep.subr.mxu0 0.0
    %132 = vmatpush1.msra.mxu0 0.0
    %133 = vmatprep.subr.mxu0 0.0
    %134 = vmatpush1.msra.mxu0 0.0
    %135 = vmatprep.subr.mxu0 0.0
    %136 = vmatpush1.msra.mxu0 0.0
    %137 = vmatprep.subr.mxu0 0.0
    %138 = vmatpush1.msra.mxu0 0.0
    %139 = vmatprep.subr.mxu0 0.0
    %140 = vmatpush1.msra.mxu0 0.0
    %141 = vmatprep.subr.mxu0 0.0
    %142 = vmatpush1.msra.mxu0 0.0
    %143 = vmatprep.subr.mxu0 0.0
    %144 = vmatpush1.msra.mxu0 0.0
    %145 = vmatprep.mubr.f32.mxu0 0.0
    %v146 = vand.u32 %v54, 4294901760
    %v147 = vsub.f32 %v54, %v146
    %v148 = vand.u32 %v147, 4294901760
    %v149 = vsub.f32 %v147, %v148
    %v150 = vand.u32 %v149, 4294901760
    %151 = vmatmul.mubr.f32.gmra.mrb[0].mxu0 %v150
    %v152 = vpop.f32.mrb[0].mxu0
    %v153 = vadd.f32 0.0, %v152
    %v154 = vpop.f32.mrb[0].mxu0
    %155 = vmatprep.mubr.f32.mxu0 0.0
    %v156 = vand.u32 %v57, 4294901760
    %v157 = vsub.f32 %v57, %v156
    %v158 = vand.u32 %v157, 4294901760
    %v159 = vsub.f32 %v157, %v158
    %v160 = vand.u32 %v159, 4294901760
    %161 = vmatmul.mubr.f32.gmra.mrb[0].mxu0 %v160
    %v162 = vpop.f32.mrb[0].mxu0
    %v163 = vadd.f32 0.0, %v162
    %v164 = vpop.f32.mrb[0].mxu0
    %165 = vmatprep.mubr.f32.mxu0 0.0
    %v166 = vand.u32 %v60, 4294901760
    %v167 = vsub.f32 %v60, %v166
    %v168 = vand.u32 %v167, 4294901760
    %v169 = vsub.f32 %v167, %v168
    %v170 = vand.u32 %v169, 4294901760
    %171 = vmatmul.mubr.f32.gmra.mrb[0].mxu0 %v170
    %v172 = vpop.f32.mrb[0].mxu0
    %v173 = vadd.f32 0.0, %v172
    %v174 = vpop.f32.mrb[0].mxu0
    %175 = vmatprep.mubr.f32.mxu0 0.0
    %v176 = vand.u32 %v63, 4294901760
    %v177 = vsub.f32 %v63, %v176
    %v178 = vand.u32 %v177, 4294901760
    %v179 = vsub.f32 %v177, %v178
    %v180 = vand.u32 %v179, 4294901760
    %181 = vmatmul.mubr.f32.gmra.mrb[0].mxu0 %v180
    %v182 = vpop.f32.mrb[0].mxu0
    %v183 = vadd.f32 0.0, %v182
    %v184 = vpop.f32.mrb[0].mxu0
    %185 = vmatprep.mubr.f32.mxu0 0.0
    %v186 = vand.u32 %v66, 4294901760
    %v187 = vsub.f32 %v66, %v186
    %v188 = vand.u32 %v187, 4294901760
    %v189 = vsub.f32 %v187, %v188
    %v190 = vand.u32 %v189, 4294901760
    %191 = vmatmul.mubr.f32.gmra.mrb[0].mxu0 %v190
    %v192 = vpop.f32.mrb[0].mxu0
    %v193 = vadd.f32 0.0, %v192
    %v194 = vpop.f32.mrb[0].mxu0
    %195 = vmatprep.mubr.f32.mxu0 0.0
    %v196 = vand.u32 %v69, 4294901760
    %v197 = vsub.f32 %v69, %v196
    %v198 = vand.u32 %v197, 4294901760
    %v199 = vsub.f32 %v197, %v198
    %v200 = vand.u32 %v199, 4294901760
    %201 = vmatmul.mubr.f32.gmra.mrb[0].mxu0 %v200
    %v202 = vpop.f32.mrb[0].mxu0
    %v203 = vadd.f32 0.0, %v202
    %v204 = vpop.f32.mrb[0].mxu0
    %205 = vmatprep.mubr.f32.mxu0 0.0
    %v206 = vand.u32 %v72, 4294901760
    %v207 = vsub.f32 %v72, %v206
    %v208 = vand.u32 %v207, 4294901760
    %v209 = vsub.f32 %v207, %v208
    %v210 = vand.u32 %v209, 4294901760
    %211 = vmatmul.mubr.f32.gmra.mrb[0].mxu0 %v210
    %v212 = vpop.f32.mrb[0].mxu0
    %v213 = vadd.f32 0.0, %v212
    %v214 = vpop.f32.mrb[0].mxu0
    %215 = vmatprep.mubr.f32.mxu0 0.0
    %v216 = vand.u32 %v75, 4294901760
    %v217 = vsub.f32 %v75, %v216
    %v218 = vand.u32 %v217, 4294901760
    %v219 = vsub.f32 %v217, %v218
    %v220 = vand.u32 %v219, 4294901760
    %221 = vmatmul.mubr.f32.gmra.mrb[0].mxu0 %v220
    %v222 = vpop.f32.mrb[0].mxu0
    %v223 = vadd.f32 0.0, %v222
    %v224 = vpop.f32.mrb[0].mxu0
    %225 = vdwg.mxu0
    %226 = vmatprep.subr.mxu0 0.0
    %v227 = vand.u32 %v48, 4294901760
    %v228 = vsub.f32 %v48, %v227
    %v229 = vand.u32 %v228, 4294901760
    %v230 = vsub.f32 %v228, %v229
    %v231 = vand.u32 %v230, 4294901760
    %232 = vmatpush1.msra.mxu0 %v231
    %233 = vmatprep.subr.mxu0 0.0
    %v234 = vand.u32 %v49, 4294901760
    %v235 = vsub.f32 %v49, %v234
    %v236 = vand.u32 %v235, 4294901760
    %v237 = vsub.f32 %v235, %v236
    %v238 = vand.u32 %v237, 4294901760
    %239 = vmatpush1.msra.mxu0 %v238
    %240 = vmatprep.subr.mxu0 0.0
    %v241 = vand.u32 %v50, 4294901760
    %v242 = vsub.f32 %v50, %v241
    %v243 = vand.u32 %v242, 4294901760
    %v244 = vsub.f32 %v242, %v243
    %v245 = vand.u32 %v244, 4294901760
    %246 = vmatpush1.msra.mxu0 %v245
    %247 = vmatprep.subr.mxu0 0.0
    %v248 = vand.u32 %v51, 4294901760
    %v249 = vsub.f32 %v51, %v248
    %v250 = vand.u32 %v249, 4294901760
    %v251 = vsub.f32 %v249, %v250
    %v252 = vand.u32 %v251, 4294901760
    %253 = vmatpush1.msra.mxu0 %v252
    %254 = vmatprep.subr.mxu0 0.0
    %255 = vmatpush1.msra.mxu0 0.0
    %256 = vmatprep.subr.mxu0 0.0
    %257 = vmatpush1.msra.mxu0 0.0
    %258 = vmatprep.subr.mxu0 0.0
    %259 = vmatpush1.msra.mxu0 0.0
    %260 = vmatprep.subr.mxu0 0.0
    %261 = vmatpush1.msra.mxu0 0.0
    %262 = vmatprep.subr.mxu0 0.0
    %263 = vmatpush1.msra.mxu0 0.0
    %264 = vmatprep.subr.mxu0 0.0
    %265 = vmatpush1.msra.mxu0 0.0
    %266 = vmatprep.subr.mxu0 0.0
    %267 = vmatpush1.msra.mxu0 0.0
    %268 = vmatprep.subr.mxu0 0.0
    %269 = vmatpush1.msra.mxu0 0.0
    %270 = vmatprep.subr.mxu0 0.0
    %271 = vmatpush1.msra.mxu0 0.0
    %272 = vmatprep.subr.mxu0 0.0
    %273 = vmatpush1.msra.mxu0 0.0
    %274 = vmatprep.subr.mxu0 0.0
    %275 = vmatpush1.msra.mxu0 0.0
    %276 = vmatprep.subr.mxu0 0.0
    %277 = vmatpush1.msra.mxu0 0.0
    %278 = vmatprep.subr.mxu0 0.0
    %279 = vmatpush1.msra.mxu0 0.0
    %280 = vmatprep.subr.mxu0 0.0
    %281 = vmatpush1.msra.mxu0 0.0
    %282 = vmatprep.subr.mxu0 0.0
    %283 = vmatpush1.msra.mxu0 0.0
    %284 = vmatprep.subr.mxu0 0.0
    %285 = vmatpush1.msra.mxu0 0.0
    %286 = vmatprep.subr.mxu0 0.0
    %287 = vmatpush1.msra.mxu0 0.0
    %288 = vmatprep.subr.mxu0 0.0
    %289 = vmatpush1.msra.mxu0 0.0
    %290 = vmatprep.subr.mxu0 0.0
    %291 = vmatpush1.msra.mxu0 0.0
    %292 = vmatprep.subr.mxu0 0.0
    %293 = vmatpush1.msra.mxu0 0.0
    %294 = vmatprep.subr.mxu0 0.0
    %295 = vmatpush1.msra.mxu0 0.0
    %296 = vmatprep.subr.mxu0 0.0
    %297 = vmatpush1.msra.mxu0 0.0
    %298 = vmatprep.subr.mxu0 0.0
    %299 = vmatpush1.msra.mxu0 0.0
    %300 = vmatprep.subr.mxu0 0.0
    %301 = vmatpush1.msra.mxu0 0.0
    %302 = vmatprep.subr.mxu0 0.0
    %303 = vmatpush1.msra.mxu0 0.0
    %304 = vmatprep.subr.mxu0 0.0
    %305 = vmatpush1.msra.mxu0 0.0
    %306 = vmatprep.subr.mxu0 0.0
    %307 = vmatpush1.msra.mxu0 0.0
    %308 = vmatprep.subr.mxu0 0.0
    %309 = vmatpush1.msra.mxu0 0.0
    %310 = vmatprep.mubr.f32.mxu0 0.0
    %v311 = vand.u32 %v54, 4294901760
    %312 = vmatmul.mubr.f32.gmra.mrb[0].mxu0 %v311
    %v313 = vpop.f32.mrb[0].mxu0
    %v314 = vadd.f32 %v153, %v313
    %v315 = vpop.f32.mrb[0].mxu0
    %316 = vmatprep.mubr.f32.mxu0 0.0
    %v317 = vand.u32 %v57, 4294901760
    %318 = vmatmul.mubr.f32.gmra.mrb[0].mxu0 %v317
    %v319 = vpop.f32.mrb[0].mxu0
    %v320 = vadd.f32 %v163, %v319
    %v321 = vpop.f32.mrb[0].mxu0
    %322 = vmatprep.mubr.f32.mxu0 0.0
    %v323 = vand.u32 %v60, 4294901760
    %324 = vmatmul.mubr.f32.gmra.mrb[0].mxu0 %v323
    %v325 = vpop.f32.mrb[0].mxu0
    %v326 = vadd.f32 %v173, %v325
    %v327 = vpop.f32.mrb[0].mxu0
    %328 = vmatprep.mubr.f32.mxu0 0.0
    %v329 = vand.u32 %v63, 4294901760
    %330 = vmatmul.mubr.f32.gmra.mrb[0].mxu0 %v329
    %v331 = vpop.f32.mrb[0].mxu0
    %v332 = vadd.f32 %v183, %v331
    %v333 = vpop.f32.mrb[0].mxu0
    %334 = vmatprep.mubr.f32.mxu0 0.0
    %v335 = vand.u32 %v66, 4294901760
    %336 = vmatmul.mubr.f32.gmra.mrb[0].mxu0 %v335
    %v337 = vpop.f32.mrb[0].mxu0
    %v338 = vadd.f32 %v193, %v337
    %v339 = vpop.f32.mrb[0].mxu0
    %340 = vmatprep.mubr.f32.mxu0 0.0
    %v341 = vand.u32 %v69, 4294901760
    %342 = vmatmul.mubr.f32.gmra.mrb[0].mxu0 %v341
    %v343 = vpop.f32.mrb[0].mxu0
    %v344 = vadd.f32 %v203, %v343
    %v345 = vpop.f32.mrb[0].mxu0
    %346 = vmatprep.mubr.f32.mxu0 0.0
    %v347 = vand.u32 %v72, 4294901760
    %348 = vmatmul.mubr.f32.gmra.mrb[0].mxu0 %v347
    %v349 = vpop.f32.mrb[0].mxu0
    %v350 = vadd.f32 %v213, %v349
    %v351 = vpop.f32.mrb[0].mxu0
    %352 = vmatprep.mubr.f32.mxu0 0.0
    %v353 = vand.u32 %v75, 4294901760
    %354 = vmatmul.mubr.f32.gmra.mrb[0].mxu0 %v353
    %v355 = vpop.f32.mrb[0].mxu0
    %v356 = vadd.f32 %v223, %v355
    %v357 = vpop.f32.mrb[0].mxu0
    %358 = vdwg.mxu0
    %359 = vmatprep.subr.mxu0 0.0
    %v360 = vand.u32 %v48, 4294901760
    %v361 = vsub.f32 %v48, %v360
    %362 = vmatpush1.msra.mxu0 %v361
    %363 = vmatprep.subr.mxu0 0.0
    %v364 = vand.u32 %v49, 4294901760
    %v365 = vsub.f32 %v49, %v364
    %366 = vmatpush1.msra.mxu0 %v365
    %367 = vmatprep.subr.mxu0 0.0
    %v368 = vand.u32 %v50, 4294901760
    %v369 = vsub.f32 %v50, %v368
    %370 = vmatpush1.msra.mxu0 %v369
    %371 = vmatprep.subr.mxu0 0.0
    %v372 = vand.u32 %v51, 4294901760
    %v373 = vsub.f32 %v51, %v372
    %374 = vmatpush1.msra.mxu0 %v373
    %375 = vmatprep.subr.mxu0 0.0
    %376 = vmatpush1.msra.mxu0 0.0
    %377 = vmatprep.subr.mxu0 0.0
    %378 = vmatpush1.msra.mxu0 0.0
    %379 = vmatprep.subr.mxu0 0.0
    %380 = vmatpush1.msra.mxu0 0.0
    %381 = vmatprep.subr.mxu0 0.0
    %382 = vmatpush1.msra.mxu0 0.0
    %383 = vmatprep.subr.mxu0 0.0
    %384 = vmatpush1.msra.mxu0 0.0
    %385 = vmatprep.subr.mxu0 0.0
    %386 = vmatpush1.msra.mxu0 0.0
    %387 = vmatprep.subr.mxu0 0.0
    %388 = vmatpush1.msra.mxu0 0.0
    %389 = vmatprep.subr.mxu0 0.0
    %390 = vmatpush1.msra.mxu0 0.0
    %391 = vmatprep.subr.mxu0 0.0
    %392 = vmatpush1.msra.mxu0 0.0
    %393 = vmatprep.subr.mxu0 0.0
    %394 = vmatpush1.msra.mxu0 0.0
    %395 = vmatprep.subr.mxu0 0.0
    %396 = vmatpush1.msra.mxu0 0.0
    %397 = vmatprep.subr.mxu0 0.0
    %398 = vmatpush1.msra.mxu0 0.0
    %399 = vmatprep.subr.mxu0 0.0
    %400 = vmatpush1.msra.mxu0 0.0
    %401 = vmatprep.subr.mxu0 0.0
    %402 = vmatpush1.msra.mxu0 0.0
    %403 = vmatprep.subr.mxu0 0.0
    %404 = vmatpush1.msra.mxu0 0.0
    %405 = vmatprep.subr.mxu0 0.0
    %406 = vmatpush1.msra.mxu0 0.0
    %407 = vmatprep.subr.mxu0 0.0
    %408 = vmatpush1.msra.mxu0 0.0
    %409 = vmatprep.subr.mxu0 0.0
    %410 = vmatpush1.msra.mxu0 0.0
    %411 = vmatprep.subr.mxu0 0.0
    %412 = vmatpush1.msra.mxu0 0.0
    %413 = vmatprep.subr.mxu0 0.0
    %414 = vmatpush1.msra.mxu0 0.0
    %415 = vmatprep.subr.mxu0 0.0
    %416 = vmatpush1.msra.mxu0 0.0
    %417 = vmatprep.subr.mxu0 0.0
    %418 = vmatpush1.msra.mxu0 0.0
    %419 = vmatprep.subr.mxu0 0.0
    %420 = vmatpush1.msra.mxu0 0.0
    %421 = vmatprep.subr.mxu0 0.0
    %422 = vmatpush1.msra.mxu0 0.0
    %423 = vmatprep.subr.mxu0 0.0
    %424 = vmatpush1.msra.mxu0 0.0
    %425 = vmatprep.subr.mxu0 0.0
    %426 = vmatpush1.msra.mxu0 0.0
    %427 = vmatprep.subr.mxu0 0.0
    %428 = vmatpush1.msra.mxu0 0.0
    %429 = vmatprep.subr.mxu0 0.0
    %430 = vmatpush1.msra.mxu0 0.0
    %431 = vmatprep.mubr.f32.mxu0 0.0
    %v432 = vand.u32 %v54, 4294901760
    %v433 = vsub.f32 %v54, %v432
    %434 = vmatmul.mubr.f32.gmra.mrb[0].mxu0 %v433
    %v435 = vpop.f32.mrb[0].mxu0
    %v436 = vadd.f32 %v314, %v435
    %v437 = vpop.f32.mrb[0].mxu0
    %438 = vmatprep.mubr.f32.mxu0 0.0
    %v439 = vand.u32 %v57, 4294901760
    %v440 = vsub.f32 %v57, %v439
    %441 = vmatmul.mubr.f32.gmra.mrb[0].mxu0 %v440
    %v442 = vpop.f32.mrb[0].mxu0
    %v443 = vadd.f32 %v320, %v442
    %v444 = vpop.f32.mrb[0].mxu0
    %445 = vmatprep.mubr.f32.mxu0 0.0
    %v446 = vand.u32 %v60, 4294901760
    %v447 = vsub.f32 %v60, %v446
    %448 = vmatmul.mubr.f32.gmra.mrb[0].mxu0 %v447
    %v449 = vpop.f32.mrb[0].mxu0
    %v450 = vadd.f32 %v326, %v449
    %v451 = vpop.f32.mrb[0].mxu0
    %452 = vmatprep.mubr.f32.mxu0 0.0
    %v453 = vand.u32 %v63, 4294901760
    %v454 = vsub.f32 %v63, %v453
    %455 = vmatmul.mubr.f32.gmra.mrb[0].mxu0 %v454
    %v456 = vpop.f32.mrb[0].mxu0
    %v457 = vadd.f32 %v332, %v456
    %v458 = vpop.f32.mrb[0].mxu0
    %459 = vmatprep.mubr.f32.mxu0 0.0
    %v460 = vand.u32 %v66, 4294901760
    %v461 = vsub.f32 %v66, %v460
    %462 = vmatmul.mubr.f32.gmra.mrb[0].mxu0 %v461
    %v463 = vpop.f32.mrb[0].mxu0
    %v464 = vadd.f32 %v338, %v463
    %v465 = vpop.f32.mrb[0].mxu0
    %466 = vmatprep.mubr.f32.mxu0 0.0
    %v467 = vand.u32 %v69, 4294901760
    %v468 = vsub.f32 %v69, %v467
    %469 = vmatmul.mubr.f32.gmra.mrb[0].mxu0 %v468
    %v470 = vpop.f32.mrb[0].mxu0
    %v471 = vadd.f32 %v344, %v470
    %v472 = vpop.f32.mrb[0].mxu0
    %473 = vmatprep.mubr.f32.mxu0 0.0
    %v474 = vand.u32 %v72, 4294901760
    %v475 = vsub.f32 %v72, %v474
    %476 = vmatmul.mubr.f32.gmra.mrb[0].mxu0 %v475
    %v477 = vpop.f32.mrb[0].mxu0
    %v478 = vadd.f32 %v350, %v477
    %v479 = vpop.f32.mrb[0].mxu0
    %480 = vmatprep.mubr.f32.mxu0 0.0
    %v481 = vand.u32 %v75, 4294901760
    %v482 = vsub.f32 %v75, %v481
    %483 = vmatmul.mubr.f32.gmra.mrb[0].mxu0 %v482
    %v484 = vpop.f32.mrb[0].mxu0
    %v485 = vadd.f32 %v356, %v484
    %v486 = vpop.f32.mrb[0].mxu0
    %487 = vdwg.mxu0
    %488 = vmatprep.subr.mxu0 0.0
    %v489 = vand.u32 %v48, 4294901760
    %490 = vmatpush1.msra.mxu0 %v489
    %491 = vmatprep.subr.mxu0 0.0
    %v492 = vand.u32 %v49, 4294901760
    %493 = vmatpush1.msra.mxu0 %v492
    %494 = vmatprep.subr.mxu0 0.0
    %v495 = vand.u32 %v50, 4294901760
    %496 = vmatpush1.msra.mxu0 %v495
    %497 = vmatprep.subr.mxu0 0.0
    %v498 = vand.u32 %v51, 4294901760
    %499 = vmatpush1.msra.mxu0 %v498
    %500 = vmatprep.subr.mxu0 0.0
    %501 = vmatpush1.msra.mxu0 0.0
    %502 = vmatprep.subr.mxu0 0.0
    %503 = vmatpush1.msra.mxu0 0.0
    %504 = vmatprep.subr.mxu0 0.0
    %505 = vmatpush1.msra.mxu0 0.0
    %506 = vmatprep.subr.mxu0 0.0
    %507 = vmatpush1.msra.mxu0 0.0
    %508 = vmatprep.subr.mxu0 0.0
    %509 = vmatpush1.msra.mxu0 0.0
    %510 = vmatprep.subr.mxu0 0.0
    %511 = vmatpush1.msra.mxu0 0.0
    %512 = vmatprep.subr.mxu0 0.0
    %513 = vmatpush1.msra.mxu0 0.0
    %514 = vmatprep.subr.mxu0 0.0
    %515 = vmatpush1.msra.mxu0 0.0
    %516 = vmatprep.subr.mxu0 0.0
    %517 = vmatpush1.msra.mxu0 0.0
    %518 = vmatprep.subr.mxu0 0.0
    %519 = vmatpush1.msra.mxu0 0.0
    %520 = vmatprep.subr.mxu0 0.0
    %521 = vmatpush1.msra.mxu0 0.0
    %522 = vmatprep.subr.mxu0 0.0
    %523 = vmatpush1.msra.mxu0 0.0
    %524 = vmatprep.subr.mxu0 0.0
    %525 = vmatpush1.msra.mxu0 0.0
    %526 = vmatprep.subr.mxu0 0.0
    %527 = vmatpush1.msra.mxu0 0.0
    %528 = vmatprep.subr.mxu0 0.0
    %529 = vmatpush1.msra.mxu0 0.0
    %530 = vmatprep.subr.mxu0 0.0
    %531 = vmatpush1.msra.mxu0 0.0
    %532 = vmatprep.subr.mxu0 0.0
    %533 = vmatpush1.msra.mxu0 0.0
    %534 = vmatprep.subr.mxu0 0.0
    %535 = vmatpush1.msra.mxu0 0.0
    %536 = vmatprep.subr.mxu0 0.0
    %537 = vmatpush1.msra.mxu0 0.0
    %538 = vmatprep.subr.mxu0 0.0
    %539 = vmatpush1.msra.mxu0 0.0
    %540 = vmatprep.subr.mxu0 0.0
    %541 = vmatpush1.msra.mxu0 0.0
    %542 = vmatprep.subr.mxu0 0.0
    %543 = vmatpush1.msra.mxu0 0.0
    %544 = vmatprep.subr.mxu0 0.0
    %545 = vmatpush1.msra.mxu0 0.0
    %546 = vmatprep.subr.mxu0 0.0
    %547 = vmatpush1.msra.mxu0 0.0
    %548 = vmatprep.subr.mxu0 0.0
    %549 = vmatpush1.msra.mxu0 0.0
    %550 = vmatprep.subr.mxu0 0.0
    %551 = vmatpush1.msra.mxu0 0.0
    %552 = vmatprep.subr.mxu0 0.0
    %553 = vmatpush1.msra.mxu0 0.0
    %554 = vmatprep.subr.mxu0 0.0
    %555 = vmatpush1.msra.mxu0 0.0
    %556 = vmatprep.mubr.f32.mxu0 0.0
    %v557 = vand.u32 %v54, 4294901760
    %v558 = vsub.f32 %v54, %v557
    %v559 = vand.u32 %v558, 4294901760
    %560 = vmatmul.mubr.f32.gmra.mrb[0].mxu0 %v559
    %v561 = vpop.f32.mrb[0].mxu0
    %v562 = vadd.f32 %v436, %v561
    %v563 = vpop.f32.mrb[0].mxu0
    %564 = vmatprep.mubr.f32.mxu0 0.0
    %v565 = vand.u32 %v57, 4294901760
    %v566 = vsub.f32 %v57, %v565
    %v567 = vand.u32 %v566, 4294901760
    %568 = vmatmul.mubr.f32.gmra.mrb[0].mxu0 %v567
    %v569 = vpop.f32.mrb[0].mxu0
    %v570 = vadd.f32 %v443, %v569
    %v571 = vpop.f32.mrb[0].mxu0
    %572 = vmatprep.mubr.f32.mxu0 0.0
    %v573 = vand.u32 %v60, 4294901760
    %v574 = vsub.f32 %v60, %v573
    %v575 = vand.u32 %v574, 4294901760
    %576 = vmatmul.mubr.f32.gmra.mrb[0].mxu0 %v575
    %v577 = vpop.f32.mrb[0].mxu0
    %v578 = vadd.f32 %v450, %v577
    %v579 = vpop.f32.mrb[0].mxu0
    %580 = vmatprep.mubr.f32.mxu0 0.0
    %v581 = vand.u32 %v63, 4294901760
    %v582 = vsub.f32 %v63, %v581
    %v583 = vand.u32 %v582, 4294901760
    %584 = vmatmul.mubr.f32.gmra.mrb[0].mxu0 %v583
    %v585 = vpop.f32.mrb[0].mxu0
    %v586 = vadd.f32 %v457, %v585
    %v587 = vpop.f32.mrb[0].mxu0
    %588 = vmatprep.mubr.f32.mxu0 0.0
    %v589 = vand.u32 %v66, 4294901760
    %v590 = vsub.f32 %v66, %v589
    %v591 = vand.u32 %v590, 4294901760
    %592 = vmatmul.mubr.f32.gmra.mrb[0].mxu0 %v591
    %v593 = vpop.f32.mrb[0].mxu0
    %v594 = vadd.f32 %v464, %v593
    %v595 = vpop.f32.mrb[0].mxu0
    %596 = vmatprep.mubr.f32.mxu0 0.0
    %v597 = vand.u32 %v69, 4294901760
    %v598 = vsub.f32 %v69, %v597
    %v599 = vand.u32 %v598, 4294901760
    %600 = vmatmul.mubr.f32.gmra.mrb[0].mxu0 %v599
    %v601 = vpop.f32.mrb[0].mxu0
    %v602 = vadd.f32 %v471, %v601
    %v603 = vpop.f32.mrb[0].mxu0
    %604 = vmatprep.mubr.f32.mxu0 0.0
    %v605 = vand.u32 %v72, 4294901760
    %v606 = vsub.f32 %v72, %v605
    %v607 = vand.u32 %v606, 4294901760
    %608 = vmatmul.mubr.f32.gmra.mrb[0].mxu0 %v607
    %v609 = vpop.f32.mrb[0].mxu0
    %v610 = vadd.f32 %v478, %v609
    %v611 = vpop.f32.mrb[0].mxu0
    %612 = vmatprep.mubr.f32.mxu0 0.0
    %v613 = vand.u32 %v75, 4294901760
    %v614 = vsub.f32 %v75, %v613
    %v615 = vand.u32 %v614, 4294901760
    %616 = vmatmul.mubr.f32.gmra.mrb[0].mxu0 %v615
    %v617 = vpop.f32.mrb[0].mxu0
    %v618 = vadd.f32 %v485, %v617
    %v619 = vpop.f32.mrb[0].mxu0
    %620 = vdwg.mxu0
    %621 = vmatprep.subr.mxu0 0.0
    %v622 = vand.u32 %v48, 4294901760
    %v623 = vsub.f32 %v48, %v622
    %v624 = vand.u32 %v623, 4294901760
    %625 = vmatpush1.msra.mxu0 %v624
    %626 = vmatprep.subr.mxu0 0.0
    %v627 = vand.u32 %v49, 4294901760
    %v628 = vsub.f32 %v49, %v627
    %v629 = vand.u32 %v628, 4294901760
    %630 = vmatpush1.msra.mxu0 %v629
    %631 = vmatprep.subr.mxu0 0.0
    %v632 = vand.u32 %v50, 4294901760
    %v633 = vsub.f32 %v50, %v632
    %v634 = vand.u32 %v633, 4294901760
    %635 = vmatpush1.msra.mxu0 %v634
    %636 = vmatprep.subr.mxu0 0.0
    %v637 = vand.u32 %v51, 4294901760
    %v638 = vsub.f32 %v51, %v637
    %v639 = vand.u32 %v638, 4294901760
    %640 = vmatpush1.msra.mxu0 %v639
    %641 = vmatprep.subr.mxu0 0.0
    %642 = vmatpush1.msra.mxu0 0.0
    %643 = vmatprep.subr.mxu0 0.0
    %644 = vmatpush1.msra.mxu0 0.0
    %645 = vmatprep.subr.mxu0 0.0
    %646 = vmatpush1.msra.mxu0 0.0
    %647 = vmatprep.subr.mxu0 0.0
    %648 = vmatpush1.msra.mxu0 0.0
    %649 = vmatprep.subr.mxu0 0.0
    %650 = vmatpush1.msra.mxu0 0.0
    %651 = vmatprep.subr.mxu0 0.0
    %652 = vmatpush1.msra.mxu0 0.0
    %653 = vmatprep.subr.mxu0 0.0
    %654 = vmatpush1.msra.mxu0 0.0
    %655 = vmatprep.subr.mxu0 0.0
    %656 = vmatpush1.msra.mxu0 0.0
    %657 = vmatprep.subr.mxu0 0.0
    %658 = vmatpush1.msra.mxu0 0.0
    %659 = vmatprep.subr.mxu0 0.0
    %660 = vmatpush1.msra.mxu0 0.0
    %661 = vmatprep.subr.mxu0 0.0
    %662 = vmatpush1.msra.mxu0 0.0
    %663 = vmatprep.subr.mxu0 0.0
    %664 = vmatpush1.msra.mxu0 0.0
    %665 = vmatprep.subr.mxu0 0.0
    %666 = vmatpush1.msra.mxu0 0.0
    %667 = vmatprep.subr.mxu0 0.0
    %668 = vmatpush1.msra.mxu0 0.0
    %669 = vmatprep.subr.mxu0 0.0
    %670 = vmatpush1.msra.mxu0 0.0
    %671 = vmatprep.subr.mxu0 0.0
    %672 = vmatpush1.msra.mxu0 0.0
    %673 = vmatprep.subr.mxu0 0.0
    %674 = vmatpush1.msra.mxu0 0.0
    %675 = vmatprep.subr.mxu0 0.0
    %676 = vmatpush1.msra.mxu0 0.0
    %677 = vmatprep.subr.mxu0 0.0
    %678 = vmatpush1.msra.mxu0 0.0
    %679 = vmatprep.subr.mxu0 0.0
    %680 = vmatpush1.msra.mxu0 0.0
    %681 = vmatprep.subr.mxu0 0.0
    %682 = vmatpush1.msra.mxu0 0.0
    %683 = vmatprep.subr.mxu0 0.0
    %684 = vmatpush1.msra.mxu0 0.0
    %685 = vmatprep.subr.mxu0 0.0
    %686 = vmatpush1.msra.mxu0 0.0
    %687 = vmatprep.subr.mxu0 0.0
    %688 = vmatpush1.msra.mxu0 0.0
    %689 = vmatprep.subr.mxu0 0.0
    %690 = vmatpush1.msra.mxu0 0.0
    %691 = vmatprep.subr.mxu0 0.0
    %692 = vmatpush1.msra.mxu0 0.0
    %693 = vmatprep.subr.mxu0 0.0
    %694 = vmatpush1.msra.mxu0 0.0
    %695 = vmatprep.subr.mxu0 0.0
    %696 = vmatpush1.msra.mxu0 0.0
    %697 = vmatprep.mubr.f32.mxu0 0.0
    %v698 = vand.u32 %v54, 4294901760
    %699 = vmatmul.mubr.f32.gmra.mrb[0].mxu0 %v698
    %v700 = vpop.f32.mrb[0].mxu0
    %v701 = vadd.f32 %v562, %v700
    %v702 = vpop.f32.mrb[0].mxu0
    %703 = vmatprep.mubr.f32.mxu0 0.0
    %v704 = vand.u32 %v57, 4294901760
    %705 = vmatmul.mubr.f32.gmra.mrb[0].mxu0 %v704
    %v706 = vpop.f32.mrb[0].mxu0
    %v707 = vadd.f32 %v570, %v706
    %v708 = vpop.f32.mrb[0].mxu0
    %709 = vmatprep.mubr.f32.mxu0 0.0
    %v710 = vand.u32 %v60, 4294901760
    %711 = vmatmul.mubr.f32.gmra.mrb[0].mxu0 %v710
    %v712 = vpop.f32.mrb[0].mxu0
    %v713 = vadd.f32 %v578, %v712
    %v714 = vpop.f32.mrb[0].mxu0
    %715 = vmatprep.mubr.f32.mxu0 0.0
    %v716 = vand.u32 %v63, 4294901760
    %717 = vmatmul.mubr.f32.gmra.mrb[0].mxu0 %v716
    %v718 = vpop.f32.mrb[0].mxu0
    %v719 = vadd.f32 %v586, %v718
    %v720 = vpop.f32.mrb[0].mxu0
    %721 = vmatprep.mubr.f32.mxu0 0.0
    %v722 = vand.u32 %v66, 4294901760
    %723 = vmatmul.mubr.f32.gmra.mrb[0].mxu0 %v722
    %v724 = vpop.f32.mrb[0].mxu0
    %v725 = vadd.f32 %v594, %v724
    %v726 = vpop.f32.mrb[0].mxu0
    %727 = vmatprep.mubr.f32.mxu0 0.0
    %v728 = vand.u32 %v69, 4294901760
    %729 = vmatmul.mubr.f32.gmra.mrb[0].mxu0 %v728
    %v730 = vpop.f32.mrb[0].mxu0
    %v731 = vadd.f32 %v602, %v730
    %v732 = vpop.f32.mrb[0].mxu0
    %733 = vmatprep.mubr.f32.mxu0 0.0
    %v734 = vand.u32 %v72, 4294901760
    %735 = vmatmul.mubr.f32.gmra.mrb[0].mxu0 %v734
    %v736 = vpop.f32.mrb[0].mxu0
    %v737 = vadd.f32 %v610, %v736
    %v738 = vpop.f32.mrb[0].mxu0
    %739 = vmatprep.mubr.f32.mxu0 0.0
    %v740 = vand.u32 %v75, 4294901760
    %741 = vmatmul.mubr.f32.gmra.mrb[0].mxu0 %v740
    %v742 = vpop.f32.mrb[0].mxu0
    %v743 = vadd.f32 %v618, %v742
    %v744 = vpop.f32.mrb[0].mxu0
    %745 = vdwg.mxu0
    %746 = vmatprep.subr.mxu0 0.0
    %v747 = vand.u32 %v48, 4294901760
    %748 = vmatpush1.msra.mxu0 %v747
    %749 = vmatprep.subr.mxu0 0.0
    %v750 = vand.u32 %v49, 4294901760
    %751 = vmatpush1.msra.mxu0 %v750
    %752 = vmatprep.subr.mxu0 0.0
    %v753 = vand.u32 %v50, 4294901760
    %754 = vmatpush1.msra.mxu0 %v753
    %755 = vmatprep.subr.mxu0 0.0
    %v756 = vand.u32 %v51, 4294901760
    %757 = vmatpush1.msra.mxu0 %v756
    %758 = vmatprep.subr.mxu0 0.0
    %759 = vmatpush1.msra.mxu0 0.0
    %760 = vmatprep.subr.mxu0 0.0
    %761 = vmatpush1.msra.mxu0 0.0
    %762 = vmatprep.subr.mxu0 0.0
    %763 = vmatpush1.msra.mxu0 0.0
    %764 = vmatprep.subr.mxu0 0.0
    %765 = vmatpush1.msra.mxu0 0.0
    %766 = vmatprep.subr.mxu0 0.0
    %767 = vmatpush1.msra.mxu0 0.0
    %768 = vmatprep.subr.mxu0 0.0
    %769 = vmatpush1.msra.mxu0 0.0
    %770 = vmatprep.subr.mxu0 0.0
    %771 = vmatpush1.msra.mxu0 0.0
    %772 = vmatprep.subr.mxu0 0.0
    %773 = vmatpush1.msra.mxu0 0.0
    %774 = vmatprep.subr.mxu0 0.0
    %775 = vmatpush1.msra.mxu0 0.0
    %776 = vmatprep.subr.mxu0 0.0
    %777 = vmatpush1.msra.mxu0 0.0
    %778 = vmatprep.subr.mxu0 0.0
    %779 = vmatpush1.msra.mxu0 0.0
    %780 = vmatprep.subr.mxu0 0.0
    %781 = vmatpush1.msra.mxu0 0.0
    %782 = vmatprep.subr.mxu0 0.0
    %783 = vmatpush1.msra.mxu0 0.0
    %784 = vmatprep.subr.mxu0 0.0
    %785 = vmatpush1.msra.mxu0 0.0
    %786 = vmatprep.subr.mxu0 0.0
    %787 = vmatpush1.msra.mxu0 0.0
    %788 = vmatprep.subr.mxu0 0.0
    %789 = vmatpush1.msra.mxu0 0.0
    %790 = vmatprep.subr.mxu0 0.0
    %791 = vmatpush1.msra.mxu0 0.0
    %792 = vmatprep.subr.mxu0 0.0
    %793 = vmatpush1.msra.mxu0 0.0
    %794 = vmatprep.subr.mxu0 0.0
    %795 = vmatpush1.msra.mxu0 0.0
    %796 = vmatprep.subr.mxu0 0.0
    %797 = vmatpush1.msra.mxu0 0.0
    %798 = vmatprep.subr.mxu0 0.0
    %799 = vmatpush1.msra.mxu0 0.0
    %800 = vmatprep.subr.mxu0 0.0
    %801 = vmatpush1.msra.mxu0 0.0
    %802 = vmatprep.subr.mxu0 0.0
    %803 = vmatpush1.msra.mxu0 0.0
    %804 = vmatprep.subr.mxu0 0.0
    %805 = vmatpush1.msra.mxu0 0.0
    %806 = vmatprep.subr.mxu0 0.0
    %807 = vmatpush1.msra.mxu0 0.0
    %808 = vmatprep.subr.mxu0 0.0
    %809 = vmatpush1.msra.mxu0 0.0
    %810 = vmatprep.subr.mxu0 0.0
    %811 = vmatpush1.msra.mxu0 0.0
    %812 = vmatprep.subr.mxu0 0.0
    %813 = vmatpush1.msra.mxu0 0.0
    %814 = vmatprep.mubr.f32.mxu0 0.0
    %v815 = vand.u32 %v54, 4294901760
    %816 = vmatmul.mubr.f32.gmra.mrb[0].mxu0 %v815
    %v817 = vpop.f32.mrb[0].mxu0
    %v818 = vadd.f32 %v701, %v817
    %v819 = vpop.f32.mrb[0].mxu0
    %820 = vmatprep.mubr.f32.mxu0 0.0
    %v821 = vand.u32 %v57, 4294901760
    %822 = vmatmul.mubr.f32.gmra.mrb[0].mxu0 %v821
    %v823 = vpop.f32.mrb[0].mxu0
    %v824 = vadd.f32 %v707, %v823
    %v825 = vpop.f32.mrb[0].mxu0
    %826 = vmatprep.mubr.f32.mxu0 0.0
    %v827 = vand.u32 %v60, 4294901760
    %828 = vmatmul.mubr.f32.gmra.mrb[0].mxu0 %v827
    %v829 = vpop.f32.mrb[0].mxu0
    %v830 = vadd.f32 %v713, %v829
    %v831 = vpop.f32.mrb[0].mxu0
    %832 = vmatprep.mubr.f32.mxu0 0.0
    %v833 = vand.u32 %v63, 4294901760
    %834 = vmatmul.mubr.f32.gmra.mrb[0].mxu0 %v833
    %v835 = vpop.f32.mrb[0].mxu0
    %v836 = vadd.f32 %v719, %v835
    %v837 = vpop.f32.mrb[0].mxu0
    %838 = vmatprep.mubr.f32.mxu0 0.0
    %v839 = vand.u32 %v66, 4294901760
    %840 = vmatmul.mubr.f32.gmra.mrb[0].mxu0 %v839
    %v841 = vpop.f32.mrb[0].mxu0
    %v842 = vadd.f32 %v725, %v841
    %v843 = vpop.f32.mrb[0].mxu0
    %844 = vmatprep.mubr.f32.mxu0 0.0
    %v845 = vand.u32 %v69, 4294901760
    %846 = vmatmul.mubr.f32.gmra.mrb[0].mxu0 %v845
    %v847 = vpop.f32.mrb[0].mxu0
    %v848 = vadd.f32 %v731, %v847
    %v849 = vpop.f32.mrb[0].mxu0
    %850 = vmatprep.mubr.f32.mxu0 0.0
    %v851 = vand.u32 %v72, 4294901760
    %852 = vmatmul.mubr.f32.gmra.mrb[0].mxu0 %v851
    %v853 = vpop.f32.mrb[0].mxu0
    %v854 = vadd.f32 %v737, %v853
    %v855 = vpop.f32.mrb[0].mxu0
    %856 = vmatprep.mubr.f32.mxu0 0.0
    %v857 = vand.u32 %v75, 4294901760
    %858 = vmatmul.mubr.f32.gmra.mrb[0].mxu0 %v857
    %v859 = vpop.f32.mrb[0].mxu0
    %v860 = vadd.f32 %v743, %v859
    %v861 = vpop.f32.mrb[0].mxu0
    %862 = vdwg.mxu0
    %vm863 = vcmask 64512
    %864 = vst.msk [vmem:[#allocation7] sm:$0xff] %vm863, %v818
    %865 = vst.msk [vmem:[#allocation7 + $0x8] sm:$0xff] %vm863, %v824
    %866 = vst.msk [vmem:[#allocation7 + $0x10] sm:$0xff] %vm863, %v830
    %867 = vst.msk [vmem:[#allocation7 + $0x18] sm:$0xff] %vm863, %v836
    %868 = vst.msk [vmem:[#allocation7 + $0x80] sm:$0xff] %vm863, %v842
    %869 = vst.msk [vmem:[#allocation7 + $0x88] sm:$0xff] %vm863, %v848
    %870 = vst.msk [vmem:[#allocation7 + $0x90] sm:$0xff] %vm863, %v854
    %871 = vst.msk [vmem:[#allocation7 + $0x98] sm:$0xff] %vm863, %v860
    %880 = vrot.lane.b32.xlu0 %v818, 120
    %v881 = vpop.permute.xlu0 %880
    %882 = vrot.lane.b32.xlu0 %v824, 120
    %v883 = vpop.permute.xlu0 %882
    %884 = vrot.lane.b32.xlu0 %v830, 120
    %v885 = vpop.permute.xlu0 %884
    %886 = vrot.lane.b32.xlu0 %v836, 120
    %v887 = vpop.permute.xlu0 %886
    %888 = vrot.lane.b32.xlu0 %v842, 120
    %v889 = vpop.permute.xlu0 %888
    %890 = vrot.lane.b32.xlu0 %v848, 120
    %v891 = vpop.permute.xlu0 %890
    %892 = vrot.lane.b32.xlu0 %v854, 120
    %v893 = vpop.permute.xlu0 %892
    %894 = vrot.lane.b32.xlu0 %v860, 120
    %v895 = vpop.permute.xlu0 %894
    %s904 = scalar_lea.vmem [#allocation7], 32
    %905 = vst.msk [vmem:[%s904] sm:$0xff] %vm863, %v881
    %906 = vst.msk [vmem:[%s904 + $0x8] sm:$0xff] %vm863, %v883
    %907 = vst.msk [vmem:[%s904 + $0x10] sm:$0xff] %vm863, %v885
    %908 = vst.msk [vmem:[%s904 + $0x18] sm:$0xff] %vm863, %v887
    %909 = vst.msk [vmem:[%s904 + $0x80] sm:$0xff] %vm863, %v889
    %910 = vst.msk [vmem:[%s904 + $0x88] sm:$0xff] %vm863, %v891
    %911 = vst.msk [vmem:[%s904 + $0x90] sm:$0xff] %vm863, %v893
    %912 = vst.msk [vmem:[%s904 + $0x98] sm:$0xff] %vm863, %v895
    %913 = vrot.lane.b32.xlu0 %v818, 112
    %v914 = vpop.permute.xlu0 %913
    %915 = vrot.lane.b32.xlu0 %v824, 112
    %v916 = vpop.permute.xlu0 %915
    %917 = vrot.lane.b32.xlu0 %v830, 112
    %v918 = vpop.permute.xlu0 %917
    %919 = vrot.lane.b32.xlu0 %v836, 112
    %v920 = vpop.permute.xlu0 %919
    %921 = vrot.lane.b32.xlu0 %v842, 112
    %v922 = vpop.permute.xlu0 %921
    %923 = vrot.lane.b32.xlu0 %v848, 112
    %v924 = vpop.permute.xlu0 %923
    %925 = vrot.lane.b32.xlu0 %v854, 112
    %v926 = vpop.permute.xlu0 %925
    %927 = vrot.lane.b32.xlu0 %v860, 112
    %v928 = vpop.permute.xlu0 %927
    %s937 = scalar_lea.vmem [#allocation7], 64
    %938 = vst.msk [vmem:[%s937] sm:$0xff] %vm863, %v914
    %939 = vst.msk [vmem:[%s937 + $0x8] sm:$0xff] %vm863, %v916
    %940 = vst.msk [vmem:[%s937 + $0x10] sm:$0xff] %vm863, %v918
    %941 = vst.msk [vmem:[%s937 + $0x18] sm:$0xff] %vm863, %v920
    %942 = vst.msk [vmem:[%s937 + $0x80] sm:$0xff] %vm863, %v922
    %943 = vst.msk [vmem:[%s937 + $0x88] sm:$0xff] %vm863, %v924
    %944 = vst.msk [vmem:[%s937 + $0x90] sm:$0xff] %vm863, %v926
    %945 = vst.msk [vmem:[%s937 + $0x98] sm:$0xff] %vm863, %v928
    %946 = vrot.lane.b32.xlu0 %v818, 104
    %v947 = vpop.permute.xlu0 %946
    %948 = vrot.lane.b32.xlu0 %v824, 104
    %v949 = vpop.permute.xlu0 %948
    %950 = vrot.lane.b32.xlu0 %v830, 104
    %v951 = vpop.permute.xlu0 %950
    %952 = vrot.lane.b32.xlu0 %v836, 104
    %v953 = vpop.permute.xlu0 %952
    %954 = vrot.lane.b32.xlu0 %v842, 104
    %v955 = vpop.permute.xlu0 %954
    %956 = vrot.lane.b32.xlu0 %v848, 104
    %v957 = vpop.permute.xlu0 %956
    %958 = vrot.lane.b32.xlu0 %v854, 104
    %v959 = vpop.permute.xlu0 %958
    %960 = vrot.lane.b32.xlu0 %v860, 104
    %v961 = vpop.permute.xlu0 %960
    %s970 = scalar_lea.vmem [#allocation7], 96
    %971 = vst.msk [vmem:[%s970] sm:$0xff] %vm863, %v947
    %972 = vst.msk [vmem:[%s970 + $0x8] sm:$0xff] %vm863, %v949
    %973 = vst.msk [vmem:[%s970 + $0x10] sm:$0xff] %vm863, %v951
    %974 = vst.msk [vmem:[%s970 + $0x18] sm:$0xff] %vm863, %v953
    %975 = vst.msk [vmem:[%s970 + $0x80] sm:$0xff] %vm863, %v955
    %976 = vst.msk [vmem:[%s970 + $0x88] sm:$0xff] %vm863, %v957
    %977 = vst.msk [vmem:[%s970 + $0x90] sm:$0xff] %vm863, %v959
    %978 = vst.msk [vmem:[%s970 + $0x98] sm:$0xff] %vm863, %v961
    // Predicated region
    $region18: #{tpu_custom_call.1} parent=1 // pred_check
      _
    $region19: #{tpu_custom_call.1} parent=1 // pred_check_branch
      %980 = sbr.rel (0) target = $region21
    $region20: #{tpu_custom_call.1} parent=1 // pred_region
      %s982 = ssub.s32 4096, 4096
      %983 = vsyncadd [#allocation4], %s982
      %s984 = sshll.u32 [#allocation7], 4
      %s985 = int_to_ptr.vmem [resolvable:$true] %s984
      %990 = dma.vmem_to_hbm [thread:$0]  %s985, 4096, %s2, [#allocation4], 128, 128, 8
    $region21: #{tpu_custom_call.1} parent=1 // pred_fallthru
      _
    // Predicated region
    $region22: #{tpu_custom_call.1} parent=1 // pred_check
      _
    $region23: #{tpu_custom_call.1} parent=1 // pred_check_branch
      %992 = sbr.rel (0) target = $region25
    $region24: #{tpu_custom_call.1} parent=1 // pred_region
      %993 = dma.done [#allocation4], 4096
    $region25: #{tpu_custom_call.1} parent=1 // pred_fallthru
      _
    %994 = vsyncpa [#allocation3], 1
    %995 = vsyncpa [#allocation6], 1
    %996 = vsyncpa [#allocation4], 1

</llo_original>
